<compile_context>
chip_gen: v7x
topology: tpu7x:2x2x1
jax: 0.10.0
libtpu: 0.0.40
codegen_flags: <defaults>
</compile_context>

<pallas_src>
import functools

import jax
import jax.numpy as jnp
from jax.experimental import pallas as pl
from jax.experimental.pallas import tpu as pltpu

ALPHA = 0.2          # LeakyReLU negative slope
NEG_BIG = -9e15      # mask value (== -9000000000000000.0 in the PyTorch code)
EPS = 1e-8


def _spatio_attn_kernel(repu1_ref, repu2_ref, lsel_ref, bones_ref, logadj_ref,
                        bias_ref, x_ref, o_ref, *, num_heads, num_nodes, time_tile):
    # Per grid step (b, t):
    #   repu1_ref : (H*N, C)    row h*N+j = W_h a1_h   (repeated N times per head)
    #   repu2_ref : (H*N, C)    row h*N+j = W_h a2_h
    #   lsel_ref  : (H*N, TLN)  tiled eye(N):  1 iff (row mod N) == (col mod N)
    #   bones_ref : (TLN, TLN)  block-diagonal ones: 1 iff same time block
    #   logadj_ref: (H*N, TLN)  tiled log(adj+eps).T, zeroed where adj == 0
    #   bias_ref  : (H*N, TLN)  tiled NEG_BIG where adj == 0 else 0
    #   x_ref     : (C, TLN)    column (tau*N + v) = x[:, v, t*TL + tau]
    #   o_ref     : (C, TLN)    same layout for the output
    H, N, TL = num_heads, num_nodes, time_tile
    TLN = TL * N

    x_cn = x_ref[...]                                   # (C, TLN)
    bones = bones_ref[...]                              # (TLN, TLN)

    # a1/a2 projections for all heads at once (rows grouped as h*N + j).
    rep1 = jnp.dot(repu1_ref[...], x_cn, preferred_element_type=jnp.float32)   # (H*N, TLN)
    rep2 = jnp.dot(repu2_ref[...], x_cn, preferred_element_type=jnp.float32)   # (H*N, TLN)

    # s1[h*N+j, tau*N+i] = a1_h . h_j(tau): keep only the in-block diagonal of rep1
    # (lsel = tiled eye) and smear it across each time block with one MXU matmul.
    s1 = jnp.dot(rep1 * lsel_ref[...], bones, preferred_element_type=jnp.float32)

    ee = s1 + rep2                                      # raw logits, transposed (j rows, i cols)
    ee = jnp.maximum(ee, ALPHA * ee)                    # LeakyReLU(0.2)
    sc = ee * logadj_ref[...] + bias_ref[...]           # * log(adj+eps); NEG_BIG where adj == 0

    # Softmax over j (sublanes) per head group; 1/H head-mean folded into the reciprocal.
    inv_h = jnp.float32(1.0 / H)
    attsum = jnp.zeros((N, TLN), jnp.float32)           # attsum[j, tau*N+i] = mean_att(tau)[i, j]
    for h in range(H):                                  # static unroll over H lane-dense slabs
        sch = sc[h * N:(h + 1) * N, :]                  # (N, TLN), sublane-aligned slice
        m = jnp.max(sch, axis=0, keepdims=True)         # (1, TLN)
        p = jnp.exp(sch - m)
        inv = inv_h / jnp.sum(p, axis=0, keepdims=True)  # only the (1, TLN) row is divided
        attsum = attsum + p * inv
    # TODO(synk): F.dropout(attention, 0.2) is stochastic; inference mode assumed (identity).

    # Block-diagonal attention (TLN, TLN): tile along sublanes, mask off-diagonal blocks,
    # then apply with a single lane-dense matmul -> a single unmasked (C, TLN) store.
    a_bd = jnp.concatenate([attsum] * TL, axis=0) * bones
    out = jnp.dot(x_cn, a_bd, preferred_element_type=jnp.float32)   # (C, TLN) == h_prime.T
    out = jnp.where(out > 0, out,
                    jnp.exp(jnp.minimum(out, 0.0)) - 1.0)           # ELU (clamped exp)
    o_ref[...] = out.astype(o_ref.dtype)


def _pick_time_tile(L, N):
    # Smallest divisor of L whose fused lane width TL*N is a multiple of 128
    # (unmasked vld/vst, dense HBM DMA).  Fall back to TL = L (lane-padded but correct).
    # We do not grow tiles further even on v5e/v6e's larger VMEM: the block-diagonal
    # application scratch and its zero-padding flops grow as (TL*N)^2.
    for tl in range(1, L + 1):
        if L % tl == 0 and (tl * N) % 128 == 0:
            return tl
    return L


def spatio_conv_layer(x, W, a, adj, *, time_tile=None):
    """Forward pass of SpatioConvLayer.  x: (n, c_in, N, L) -> (n, c_in, N, L)."""
    n, c, N, L = x.shape
    H = W.shape[0]

    if time_tile is None:
        time_tile = _pick_time_tile(L, N)
    assert L % time_tile == 0, "time_tile must divide L"
    TL = time_tile
    Lb = L // TL
    TLN = TL * N
    f32 = jnp.float32

    # ---- wrapper-side constant folding (tiny, done once by XLA) ----
    a1 = a[:, :c, 0]                                   # (H, C)
    a2 = a[:, c:, 0]                                   # (H, C)
    u1 = jnp.einsum('hcd,hd->hc', W, a1)               # (H, C):  a1 . h_j == u1 . x_j
    u2 = jnp.einsum('hcd,hd->hc', W, a2)               # (H, C):  a2 . h_i == u2 . x_i
    rep_u1 = jnp.repeat(u1, N, axis=0).astype(f32)     # (H*N, C): each head row repeated N times
    rep_u2 = jnp.repeat(u2, N, axis=0).astype(f32)     # (H*N, C)

    adjT = jnp.transpose(adj).astype(f32)              # (N, N)
    mask0 = adjT == 0.0
    logadjT = jnp.where(mask0, 0.0, jnp.log(adjT + EPS))
    biasT = jnp.where(mask0, jnp.float32(NEG_BIG), 0.0)
    lsel_big = jnp.tile(jnp.eye(N, dtype=f32), (H, TL))            # (H*N, TLN)
    logadj_big = jnp.tile(logadjT, (H, TL)).astype(f32)            # (H*N, TLN)
    bias_big = jnp.tile(biasT, (H, TL)).astype(f32)                # (H*N, TLN)
    block_ones = jnp.kron(jnp.eye(TL, dtype=f32), jnp.ones((N, N), f32))   # (TLN, TLN)

    # ---- layout plumbing: channel-major, time-fused, lane-dense blocks ----
    xt = jnp.transpose(x, (0, 3, 1, 2)).reshape(n, Lb, TL, c, N)   # (n, Lb, TL, C, N)
    x4 = jnp.transpose(xt, (0, 1, 3, 2, 4)).reshape(n, Lb, c, TLN)

    kernel = functools.partial(_spatio_attn_kernel,
                               num_heads=H, num_nodes=N, time_tile=TL)

    grid_steps = n * Lb
    flops_step = (4 * H * N * c * TLN                  # rep1 + rep2
                  + 2 * H * N * TLN * TLN              # s1 smear matmul
                  + 2 * c * TLN * TLN                  # attention application
                  + 14 * H * N * TLN)                  # elementwise / softmax
    cost = pl.CostEstimate(
        flops=grid_steps * flops_step,
        transcendentals=grid_steps * (H * N * TLN + c * TLN),
        bytes_accessed=4 * (2 * n * L * N * c + 3 * H * N * TLN + TLN * TLN + 2 * H * N * c),
    )

    out4 = pl.pallas_call(
        kernel,
        out_shape=jax.ShapeDtypeStruct((n, Lb, c, TLN), x.dtype),
        grid=(n, Lb),
        in_specs=[
            pl.BlockSpec((H * N, c), lambda b, t: (0, 0)),          # rep_u1
            pl.BlockSpec((H * N, c), lambda b, t: (0, 0)),          # rep_u2
            pl.BlockSpec((H * N, TLN), lambda b, t: (0, 0)),        # lsel_big
            pl.BlockSpec((TLN, TLN), lambda b, t: (0, 0)),          # block_ones
            pl.BlockSpec((H * N, TLN), lambda b, t: (0, 0)),        # logadj_big
            pl.BlockSpec((H * N, TLN), lambda b, t: (0, 0)),        # bias_big
            pl.BlockSpec((None, None, c, TLN), lambda b, t: (b, t, 0, 0)),
        ],
        out_specs=pl.BlockSpec((None, None, c, TLN), lambda b, t: (b, t, 0, 0)),
        compiler_params=pltpu.CompilerParams(
            dimension_semantics=("parallel", "parallel")),
        cost_estimate=cost,
    )(rep_u1, rep_u2, lsel_big, block_ones, logadj_big, bias_big, x4)

    out = out4.reshape(n, Lb, c, TL, N)
    out = jnp.transpose(out, (0, 2, 4, 1, 3))          # (n, C, N, Lb, TL)
    return out.reshape(n, c, N, L)


def reference(x, W, a, adj, num_heads, c_in):
    """Pure-JAX mirror of the PyTorch forward (dropout disabled)."""
    n = x.shape[0]
    L = x.shape[3]
    N = adj.shape[0]
    h = jnp.einsum('ncvl,hcd->hndvl', x, W)                       # (H, n, d, N, L)
    part1 = jnp.tile(h, (1, 1, 1, N, 1))                          # (H, n, d, N*N, L)
    part2 = jnp.transpose(h, (0, 1, 4, 3, 2))                     # (H, n, L, N, d)
    part2 = jnp.tile(part2, (1, 1, 1, 1, N))                      # (H, n, L, N, d*N)
    part2 = part2.reshape(num_heads, -1, L, N * N, c_in)
    part2 = jnp.transpose(part2, (0, 1, 4, 3, 2))                 # (H, n, d, N*N, L)
    e = jnp.concatenate([part1, part2], axis=2)                   # (H, n, 2d, N*N, L)
    e = jnp.transpose(e, (0, 1, 3, 4, 2))                         # (H, n, N*N, L, 2d)
    flat = e.reshape(num_heads, -1, 2 * c_in)
    out = jnp.einsum('hbc,hco->hbo', flat, a)                     # bmm with a
    out = jnp.where(out > 0, out, 0.2 * out)                      # LeakyReLU
    e_out = out.reshape(num_heads, -1, N * N, L)
    e_out = jnp.transpose(e_out, (0, 1, 3, 2))
    ee = e_out.reshape(num_heads, n, L, N, N)
    mul_res = ee * jnp.log(adj + 1e-8)
    attention = jnp.where(adj == 0, -9e15, mul_res)
    attention = jax.nn.softmax(attention, axis=4)
    mean_attention = jnp.mean(attention, axis=0)                  # (n, L, N, N)
    att_ = mean_attention.reshape(-1, N, N)
    x_ = jnp.transpose(x, (0, 3, 2, 1)).reshape(-1, N, c_in)
    h_prime = jnp.einsum('bij,bjc->bic', att_, x_).reshape(-1, L, N, c_in)
    h_prime = jnp.transpose(h_prime, (0, 3, 2, 1))                # (n, c, N, L)
    return jnp.where(h_prime > 0, h_prime, jnp.exp(h_prime) - 1.0)


if __name__ == "__main__":
    n, C, N, L, H = 2, 4, 16, 8, 4     # batch, c_in(=c_out), num_nodes, seq len, heads

    key = jax.random.PRNGKey(0)
    kx, kw, ka, km, kv = jax.random.split(key, 5)

    gain = 1.414
    def xavier_uniform(k, shape):
        fan_in = shape[1] * shape[2]
        fan_out = shape[0] * shape[2]
        bound = gain * (6.0 / (fan_in + fan_out)) ** 0.5
        return jax.random.uniform(k, shape, jnp.float32, -bound, bound)

    x = jax.random.normal(kx, (n, C, N, L), jnp.float32)
    W = xavier_uniform(kw, (H, C, C))
    a = xavier_uniform(ka, (H, 2 * C, 1))

    # Deterministic sparse positive adjacency with self-loops.
    mask = (jax.random.uniform(km, (N, N)) > 0.4).astype(jnp.float32)
    mask = jnp.maximum(mask, jnp.eye(N, dtype=jnp.float32))
    adj = mask * jax.random.uniform(kv, (N, N), jnp.float32, 0.1, 1.0)

    out = spatio_conv_layer(x, W, a, adj)
    out = jax.block_until_ready(out)

    ref = reference(x, W, a, adj, H, C)
    assert out.shape == (n, C, N, L), out.shape
    max_err = float(jnp.max(jnp.abs(out - ref)))
    assert jnp.allclose(out, ref, atol=1e-4, rtol=1e-4), max_err
    print("KERNEL_OK")
</pallas_src>

<mosaic_0001>
module attributes {stable_mosaic.version = 11 : i64} {
  func.func @_spatio_attn_kernel(%arg0: i32, %arg1: i32, %arg2: memref<64x4xf32, #tpu.memory_space<vmem>>, %arg3: memref<64x4xf32, #tpu.memory_space<vmem>>, %arg4: memref<64x128xf32, #tpu.memory_space<vmem>>, %arg5: memref<128x128xf32, #tpu.memory_space<vmem>>, %arg6: memref<64x128xf32, #tpu.memory_space<vmem>>, %arg7: memref<64x128xf32, #tpu.memory_space<vmem>>, %arg8: memref<1x1x4x128xf32, #tpu.memory_space<vmem>>, %arg9: memref<1x1x4x128xf32, #tpu.memory_space<vmem>>) attributes {dimension_semantics = [#tpu.dimension_semantics<parallel>, #tpu.dimension_semantics<parallel>], iteration_bounds = array<i64: 2, 1>, scalar_prefetch = 0 : i64, scratch_operands = 0 : i64, tpu.core_type = #tpu.core_type<tc>, window_params = [{pipeline_mode = #tpu.pipeline_mode<synchronous>, transform_indices = @transform_0, window_bounds = array<i64: 64, 4>}, {pipeline_mode = #tpu.pipeline_mode<synchronous>, transform_indices = @transform_1, window_bounds = array<i64: 64, 4>}, {pipeline_mode = #tpu.pipeline_mode<synchronous>, transform_indices = @transform_2, window_bounds = array<i64: 64, 128>}, {pipeline_mode = #tpu.pipeline_mode<synchronous>, transform_indices = @transform_3, window_bounds = array<i64: 128, 128>}, {pipeline_mode = #tpu.pipeline_mode<synchronous>, transform_indices = @transform_4, window_bounds = array<i64: 64, 128>}, {pipeline_mode = #tpu.pipeline_mode<synchronous>, transform_indices = @transform_5, window_bounds = array<i64: 64, 128>}, {transform_indices = @transform_6, window_bounds = array<i64: 1, 1, 4, 128>}, {transform_indices = @transform_7, window_bounds = array<i64: 1, 1, 4, 128>}]} {
    %c0 = arith.constant 0 : index
    %c0_0 = arith.constant 0 : index
    %c0_1 = arith.constant 0 : index
    %c0_2 = arith.constant 0 : index
    %0 = vector.load %arg8[%c0, %c0_0, %c0_1, %c0_2] : memref<1x1x4x128xf32, #tpu.memory_space<vmem>>, vector<1x1x4x128xf32>
    %1 = vector.shape_cast %0 : vector<1x1x4x128xf32> to vector<4x128xf32>
    %c0_3 = arith.constant 0 : index
    %c0_4 = arith.constant 0 : index
    %2 = vector.load %arg5[%c0_3, %c0_4] : memref<128x128xf32, #tpu.memory_space<vmem>>, vector<128x128xf32>
    %c0_5 = arith.constant 0 : index
    %c0_6 = arith.constant 0 : index
    %3 = vector.load %arg2[%c0_5, %c0_6] : memref<64x4xf32, #tpu.memory_space<vmem>>, vector<64x4xf32>
    %cst = arith.constant dense<0.000000e+00> : vector<64x128xf32>
    %4 = tpu.matmul %3, %1, %cst {dimension_numbers = #tpu.dot_dimension_numbers<[1], [0], [0], [1], [0, 0, 1, 1], [], []>} : vector<64x4xf32>, vector<4x128xf32>, vector<64x128xf32> -> vector<64x128xf32>
    %c0_7 = arith.constant 0 : index
    %c0_8 = arith.constant 0 : index
    %5 = vector.load %arg3[%c0_7, %c0_8] : memref<64x4xf32, #tpu.memory_space<vmem>>, vector<64x4xf32>
    %cst_9 = arith.constant dense<0.000000e+00> : vector<64x128xf32>
    %6 = tpu.matmul %5, %1, %cst_9 {dimension_numbers = #tpu.dot_dimension_numbers<[1], [0], [0], [1], [0, 0, 1, 1], [], []>} : vector<64x4xf32>, vector<4x128xf32>, vector<64x128xf32> -> vector<64x128xf32>
    %c0_10 = arith.constant 0 : index
    %c0_11 = arith.constant 0 : index
    %7 = vector.load %arg4[%c0_10, %c0_11] : memref<64x128xf32, #tpu.memory_space<vmem>>, vector<64x128xf32>
    %8 = arith.mulf %4, %7 : vector<64x128xf32>
    %cst_12 = arith.constant dense<0.000000e+00> : vector<64x128xf32>
    %9 = tpu.matmul %8, %2, %cst_12 {dimension_numbers = #tpu.dot_dimension_numbers<[1], [0], [0], [1], [0, 0, 1, 1], [], []>} : vector<64x128xf32>, vector<128x128xf32>, vector<64x128xf32> -> vector<64x128xf32>
    %10 = arith.addf %9, %6 : vector<64x128xf32>
    %cst_13 = arith.constant 2.000000e-01 : f32
    %11 = vector.broadcast %cst_13 : f32 to vector<64x128xf32>
    %12 = arith.mulf %11, %10 : vector<64x128xf32>
    %13 = arith.maximumf %10, %12 : vector<64x128xf32>
    %c0_14 = arith.constant 0 : index
    %c0_15 = arith.constant 0 : index
    %14 = vector.load %arg6[%c0_14, %c0_15] : memref<64x128xf32, #tpu.memory_space<vmem>>, vector<64x128xf32>
    %15 = arith.mulf %13, %14 : vector<64x128xf32>
    %c0_16 = arith.constant 0 : index
    %c0_17 = arith.constant 0 : index
    %16 = vector.load %arg7[%c0_16, %c0_17] : memref<64x128xf32, #tpu.memory_space<vmem>>, vector<64x128xf32>
    %17 = arith.addf %15, %16 : vector<64x128xf32>
    %cst_18 = arith.constant 0.000000e+00 : f32
    %18 = vector.broadcast %cst_18 : f32 to vector<16x128xf32>
    %19 = vector.extract_strided_slice %17 {offsets = [0, 0], sizes = [16, 128], strides = [1, 1]} : vector<64x128xf32> to vector<16x128xf32>
    %cst_19 = arith.constant dense<0xFF800000> : vector<128xf32>
    %20 = vector.multi_reduction <maximumf>, %19, %cst_19 [0] : vector<16x128xf32> to vector<128xf32>
    %21 = vector.shape_cast %20 : vector<128xf32> to vector<1x128xf32>
    %22 = vector.broadcast %21 : vector<1x128xf32> to vector<16x128xf32>
    %23 = arith.subf %19, %22 : vector<16x128xf32>
    %24 = math.exp %23 : vector<16x128xf32>
    %cst_20 = arith.constant dense<0.000000e+00> : vector<128xf32>
    %25 = vector.multi_reduction <add>, %24, %cst_20 [0] : vector<16x128xf32> to vector<128xf32>
    %26 = vector.shape_cast %25 : vector<128xf32> to vector<1x128xf32>
    %cst_21 = arith.constant 2.500000e-01 : f32
    %27 = vector.broadcast %cst_21 : f32 to vector<1x128xf32>
    %28 = arith.divf %27, %26 : vector<1x128xf32>
    %29 = vector.broadcast %28 : vector<1x128xf32> to vector<16x128xf32>
    %30 = arith.mulf %24, %29 : vector<16x128xf32>
    %31 = arith.addf %18, %30 : vector<16x128xf32>
    %32 = vector.extract_strided_slice %17 {offsets = [16, 0], sizes = [16, 128], strides = [1, 1]} : vector<64x128xf32> to vector<16x128xf32>
    %cst_22 = arith.constant dense<0xFF800000> : vector<128xf32>
    %33 = vector.multi_reduction <maximumf>, %32, %cst_22 [0] : vector<16x128xf32> to vector<128xf32>
    %34 = vector.shape_cast %33 : vector<128xf32> to vector<1x128xf32>
    %35 = vector.broadcast %34 : vector<1x128xf32> to vector<16x128xf32>
    %36 = arith.subf %32, %35 : vector<16x128xf32>
    %37 = math.exp %36 : vector<16x128xf32>
    %cst_23 = arith.constant dense<0.000000e+00> : vector<128xf32>
    %38 = vector.multi_reduction <add>, %37, %cst_23 [0] : vector<16x128xf32> to vector<128xf32>
    %39 = vector.shape_cast %38 : vector<128xf32> to vector<1x128xf32>
    %cst_24 = arith.constant 2.500000e-01 : f32
    %40 = vector.broadcast %cst_24 : f32 to vector<1x128xf32>
    %41 = arith.divf %40, %39 : vector<1x128xf32>
    %42 = vector.broadcast %41 : vector<1x128xf32> to vector<16x128xf32>
    %43 = arith.mulf %37, %42 : vector<16x128xf32>
    %44 = arith.addf %31, %43 : vector<16x128xf32>
    %45 = vector.extract_strided_slice %17 {offsets = [32, 0], sizes = [16, 128], strides = [1, 1]} : vector<64x128xf32> to vector<16x128xf32>
    %cst_25 = arith.constant dense<0xFF800000> : vector<128xf32>
    %46 = vector.multi_reduction <maximumf>, %45, %cst_25 [0] : vector<16x128xf32> to vector<128xf32>
    %47 = vector.shape_cast %46 : vector<128xf32> to vector<1x128xf32>
    %48 = vector.broadcast %47 : vector<1x128xf32> to vector<16x128xf32>
    %49 = arith.subf %45, %48 : vector<16x128xf32>
    %50 = math.exp %49 : vector<16x128xf32>
    %cst_26 = arith.constant dense<0.000000e+00> : vector<128xf32>
    %51 = vector.multi_reduction <add>, %50, %cst_26 [0] : vector<16x128xf32> to vector<128xf32>
    %52 = vector.shape_cast %51 : vector<128xf32> to vector<1x128xf32>
    %cst_27 = arith.constant 2.500000e-01 : f32
    %53 = vector.broadcast %cst_27 : f32 to vector<1x128xf32>
    %54 = arith.divf %53, %52 : vector<1x128xf32>
    %55 = vector.broadcast %54 : vector<1x128xf32> to vector<16x128xf32>
    %56 = arith.mulf %50, %55 : vector<16x128xf32>
    %57 = arith.addf %44, %56 : vector<16x128xf32>
    %58 = vector.extract_strided_slice %17 {offsets = [48, 0], sizes = [16, 128], strides = [1, 1]} : vector<64x128xf32> to vector<16x128xf32>
    %cst_28 = arith.constant dense<0xFF800000> : vector<128xf32>
    %59 = vector.multi_reduction <maximumf>, %58, %cst_28 [0] : vector<16x128xf32> to vector<128xf32>
    %60 = vector.shape_cast %59 : vector<128xf32> to vector<1x128xf32>
    %61 = vector.broadcast %60 : vector<1x128xf32> to vector<16x128xf32>
    %62 = arith.subf %58, %61 : vector<16x128xf32>
    %63 = math.exp %62 : vector<16x128xf32>
    %cst_29 = arith.constant dense<0.000000e+00> : vector<128xf32>
    %64 = vector.multi_reduction <add>, %63, %cst_29 [0] : vector<16x128xf32> to vector<128xf32>
    %65 = vector.shape_cast %64 : vector<128xf32> to vector<1x128xf32>
    %cst_30 = arith.constant 2.500000e-01 : f32
    %66 = vector.broadcast %cst_30 : f32 to vector<1x128xf32>
    %67 = arith.divf %66, %65 : vector<1x128xf32>
    %68 = vector.broadcast %67 : vector<1x128xf32> to vector<16x128xf32>
    %69 = arith.mulf %63, %68 : vector<16x128xf32>
    %70 = arith.addf %57, %69 : vector<16x128xf32>
    %71 = tpu.concatenate %70, %70, %70, %70, %70, %70, %70, %70 in 0 : vector<16x128xf32>, vector<16x128xf32>, vector<16x128xf32>, vector<16x128xf32>, vector<16x128xf32>, vector<16x128xf32>, vector<16x128xf32>, vector<16x128xf32> -> vector<128x128xf32>
    %72 = arith.mulf %71, %2 : vector<128x128xf32>
    %cst_31 = arith.constant dense<0.000000e+00> : vector<4x128xf32>
    %73 = tpu.matmul %1, %72, %cst_31 {dimension_numbers = #tpu.dot_dimension_numbers<[1], [0], [0], [1], [0, 0, 1, 1], [], []>} : vector<4x128xf32>, vector<128x128xf32>, vector<4x128xf32> -> vector<4x128xf32>
    %cst_32 = arith.constant 0.000000e+00 : f32
    %74 = vector.broadcast %cst_32 : f32 to vector<4x128xf32>
    %75 = arith.cmpf ogt, %73, %74 : vector<4x128xf32>
    %cst_33 = arith.constant 0.000000e+00 : f32
    %76 = vector.broadcast %cst_33 : f32 to vector<4x128xf32>
    %77 = arith.minimumf %73, %76 : vector<4x128xf32>
    %78 = math.exp %77 : vector<4x128xf32>
    %cst_34 = arith.constant 1.000000e+00 : f32
    %79 = vector.broadcast %cst_34 : f32 to vector<4x128xf32>
    %80 = arith.subf %78, %79 : vector<4x128xf32>
    %81 = arith.select %75, %73, %80 : vector<4x128xi1>, vector<4x128xf32>
    %c0_35 = arith.constant 0 : index
    %c0_36 = arith.constant 0 : index
    %c0_37 = arith.constant 0 : index
    %c0_38 = arith.constant 0 : index
    %82 = vector.load %arg9[%c0_35, %c0_36, %c0_37, %c0_38] : memref<1x1x4x128xf32, #tpu.memory_space<vmem>>, vector<1x1x4x128xf32>
    %83 = vector.shape_cast %82 : vector<1x1x4x128xf32> to vector<4x128xf32>
    %84 = vector.shape_cast %81 : vector<4x128xf32> to vector<1x1x4x128xf32>
    tpu.vector_store %arg9[%c0_35, %c0_36, %c0_37, %c0_38], %84 {strides = array<i32>} : memref<1x1x4x128xf32, #tpu.memory_space<vmem>>, vector<1x1x4x128xf32>,
    return
  }
  func.func @transform_0(%arg0: i32, %arg1: i32) -> (i32, i32) {
    %c0_i32 = arith.constant 0 : i32
    %c0_i32_0 = arith.constant 0 : i32
    %c0_i32_1 = arith.constant 0 : i32
    return %c0_i32, %c0_i32_0 : i32, i32
  }
  func.func @transform_1(%arg0: i32, %arg1: i32) -> (i32, i32) {
    %c0_i32 = arith.constant 0 : i32
    %c0_i32_0 = arith.constant 0 : i32
    %c0_i32_1 = arith.constant 0 : i32
    return %c0_i32, %c0_i32_0 : i32, i32
  }
  func.func @transform_2(%arg0: i32, %arg1: i32) -> (i32, i32) {
    %c0_i32 = arith.constant 0 : i32
    %c0_i32_0 = arith.constant 0 : i32
    %c0_i32_1 = arith.constant 0 : i32
    return %c0_i32, %c0_i32_0 : i32, i32
  }
  func.func @transform_3(%arg0: i32, %arg1: i32) -> (i32, i32) {
    %c0_i32 = arith.constant 0 : i32
    %c0_i32_0 = arith.constant 0 : i32
    %c0_i32_1 = arith.constant 0 : i32
    return %c0_i32, %c0_i32_0 : i32, i32
  }
  func.func @transform_4(%arg0: i32, %arg1: i32) -> (i32, i32) {
    %c0_i32 = arith.constant 0 : i32
    %c0_i32_0 = arith.constant 0 : i32
    %c0_i32_1 = arith.constant 0 : i32
    return %c0_i32, %c0_i32_0 : i32, i32
  }
  func.func @transform_5(%arg0: i32, %arg1: i32) -> (i32, i32) {
    %c0_i32 = arith.constant 0 : i32
    %c0_i32_0 = arith.constant 0 : i32
    %c0_i32_1 = arith.constant 0 : i32
    return %c0_i32, %c0_i32_0 : i32, i32
  }
  func.func @transform_6(%arg0: i32, %arg1: i32) -> (i32, i32, i32, i32) {
    %c0_i32 = arith.constant 0 : i32
    %c0_i32_0 = arith.constant 0 : i32
    %c0_i32_1 = arith.constant 0 : i32
    return %arg0, %arg1, %c0_i32, %c0_i32_0 : i32, i32, i32, i32
  }
  func.func @transform_7(%arg0: i32, %arg1: i32) -> (i32, i32, i32, i32) {
    %c0_i32 = arith.constant 0 : i32
    %c0_i32_0 = arith.constant 0 : i32
    %c0_i32_1 = arith.constant 0 : i32
    return %arg0, %arg1, %c0_i32, %c0_i32_0 : i32, i32, i32, i32
  }
}

</mosaic_0001>

<llo_original>
// kernel: tpu_custom_call.1
$region0: #{tpu_custom_call.1}
  #allocation0 [shape = 'u32[]', space=smem, size = 0x4, offset = 0x4, fixed_abs, tag = 'smem constant byte address 0x4 - core index']
  #allocation1 [shape = 'u32[144,128]{1,0:T(1,128)}', space=vmem, size = 0x12000, scoped, tag = 'internal scratch']
  %s0 = inlined_call_operand.vmem [shape: f32[64,4], index: 0, kind: input, shape index: {}]
  %s1 = inlined_call_operand.vmem [shape: f32[64,4], index: 1, kind: input, shape index: {}]
  %s2 = inlined_call_operand.hbm [shape: f32[64,128], index: 2, kind: input, shape index: {}]
  %s3 = inlined_call_operand.vmem [shape: f32[128,128], index: 3, kind: input, shape index: {}]
  %s4 = inlined_call_operand.hbm [shape: f32[64,128], index: 4, kind: input, shape index: {}]
  %s5 = inlined_call_operand.hbm [shape: f32[64,128], index: 5, kind: input, shape index: {}]
  %s6 = inlined_call_operand.vmem [shape: f32[2,1,4,128], index: 6, kind: input, shape index: {}]
  %s7 = inlined_call_operand.hbm [shape: f32[2,1,4,128], index: 7, kind: output, shape index: {}]
  %s8 = sld [smem:[#allocation0]]
  $region73: #{tpu_custom_call.1} parent=0
    _
  %s10 = ssub.s32 1, %s8
  %s11 = scalar_select 0, %s10, %s8
  $region1: #{tpu_custom_call.1} parent=0
    #allocation2 [shape = 'u8[32768]{0}', space=vmem, size = 0x8000, scoped, tag = 'input window, operand 2, single buffered']
    #allocation3 [shape = 's32[2]{0}', space=sflag, size = 0x8, scoped, tag = 'scoped memory for tpu_custom_call.1']
    #allocation4 [shape = 's32[2]{0}', space=sflag, size = 0x8, scoped, tag = 'scoped memory for tpu_custom_call.1']
    #allocation5 [shape = 'u8[32768]{0}', space=vmem, size = 0x8000, scoped, tag = 'input window, operand 4, single buffered']
    #allocation6 [shape = 's32[1]{0}', space=sflag, size = 0x4, scoped, tag = 'scoped memory for tpu_custom_call.1']
    #allocation7 [shape = 'u8[32768]{0}', space=vmem, size = 0x8000, scoped, tag = 'input window, operand 5, single buffered']
    #allocation8 [shape = 'u8[4096]{0}', space=vmem, size = 0x1000, scoped, tag = 'output window, operand 0']
    %12 = vsyncpa [#allocation3], 0
    %13 = vsyncpa [#allocation6], 0
    %14 = vsyncpa [#allocation4], 0
    %s15 = scalar_lea.sflag [#allocation4], 1
    %16 = vsyncpa %s15, 0
    loop: start=0, step=1, limit=4
    $region2: #{tpu_custom_call.1} parent=1 // loop_pre_header
      _
    $region3: #{tpu_custom_call.1} parent=1 // loop_header
      %s18 = sphi 0, %s22
      %p19 = scmp.ge.s32.totalorder %s18, 4
      %s25 = sphi 0, %s37
      %s26 = sphi 0, %s33
      %s27 = sphi 0, %s25
      %s28 = sphi 0, %s26
      %s29 = sphi 0, %s27
      %s30 = sphi 0, %s28
      %s38 = sphi 0, %s38
      %s40 = sphi 0, %s38
      %s41 = sphi 0, %s40
      %s55 = sphi 0, %s41
      %s59 = sphi 0, %s59
      %s61 = sphi 0, %s59
      %s62 = sphi 0, %s61
      %s76 = sphi 0, %s62
      %s80 = sphi 0, %s80
      %s82 = sphi 0, %s80
      %s83 = sphi 0, %s82
      %s97 = sphi 0, %s83
      %s101 = sphi 0, %s101
      %s103 = sphi 0, %s101
      %s104 = sphi 0, %s103
      %s118 = sphi 0, %s104
      %s122 = sphi 0, %s122
      %s124 = sphi 0, %s122
      %s125 = sphi 0, %s124
      %s139 = sphi 0, %s125
      %s143 = sphi 0, %s143
      %s145 = sphi 0, %s143
      %s146 = sphi 0, %s145
      %s160 = sphi 0, %s146
      %s168 = sphi 0, %s170
      %s171 = sphi 0, %s168
      %s172 = sphi 0, %s171
      %s188 = sphi 0, %s172
      %s196 = sphi 0, %s198
      %s199 = sphi 0, %s196
      %s200 = sphi 0, %s199
      %s216 = sphi 0, %s200
    $region4: #{tpu_custom_call.1} parent=1 // loop_header_branch
      %21 = sbr.rel (%p19) target = $region8
    $region5: #{tpu_custom_call.1} parent=1 // loop_body
      %s23 = ssub.s32 %s18, 1
      %s24 = ssub.s32 %s18, 2
      %s31 = sadd.s32 1, %s26
      %p32 = scmp.ge.s32.totalorder %s31, 1
      %s33 = scalar_select %p32, 0, %s31
      %s34 = sadd.s32 1, %s25
      %s35 = scalar_select %p32, %s34, %s25
      %p36 = scmp.ge.s32.totalorder %s35, 2
      %s37 = scalar_select %p36, 0, %s35
      %s39 = sadd.s32 %s38, 1
      %p42 = scmp.eq.s32.totalorder %s18, 1
      %p43 = scmp.ne.s32.totalorder %s38, %s40
      %p44 = scmp.eq.s32.totalorder %s18, 0
      %p45 = por %p43, %p44
      %p46 = scmp.ne.s32.totalorder %s38, %s40
      %p47 = scmp.eq.s32.totalorder %s23, 1
      %p48 = por %p46, %p47
      %p49 = scmp.ne.s32.totalorder %s40, %s41
      %p50 = scmp.eq.s32.totalorder %s23, 0
      %p51 = por %p49, %p50
      %p52 = scmp.ne.s32.totalorder %s40, %s41
      %p53 = scmp.eq.s32.totalorder %s24, 1
      %p54 = por %p52, %p53
      %p56 = scmp.ne.s32.totalorder %s41, %s55
      %p57 = scmp.eq.s32.totalorder %s24, 0
      %p58 = por %p56, %p57
      %s60 = sadd.s32 %s59, 1
      %p63 = scmp.eq.s32.totalorder %s18, 1
      %p64 = scmp.ne.s32.totalorder %s59, %s61
      %p65 = scmp.eq.s32.totalorder %s18, 0
      %p66 = por %p64, %p65
      %p67 = scmp.ne.s32.totalorder %s59, %s61
      %p68 = scmp.eq.s32.totalorder %s23, 1
      %p69 = por %p67, %p68
      %p70 = scmp.ne.s32.totalorder %s61, %s62
      %p71 = scmp.eq.s32.totalorder %s23, 0
      %p72 = por %p70, %p71
      %p73 = scmp.ne.s32.totalorder %s61, %s62
      %p74 = scmp.eq.s32.totalorder %s24, 1
      %p75 = por %p73, %p74
      %p77 = scmp.ne.s32.totalorder %s62, %s76
      %p78 = scmp.eq.s32.totalorder %s24, 0
      %p79 = por %p77, %p78
      %s81 = sadd.s32 %s80, 1
      %p84 = scmp.eq.s32.totalorder %s18, 1
      %p85 = scmp.ne.s32.totalorder %s80, %s82
      %p86 = scmp.eq.s32.totalorder %s18, 0
      %p87 = por %p85, %p86
      %p88 = scmp.ne.s32.totalorder %s80, %s82
      %p89 = scmp.eq.s32.totalorder %s23, 1
      %p90 = por %p88, %p89
      %p91 = scmp.ne.s32.totalorder %s82, %s83
      %p92 = scmp.eq.s32.totalorder %s23, 0
      %p93 = por %p91, %p92
      %p94 = scmp.ne.s32.totalorder %s82, %s83
      %p95 = scmp.eq.s32.totalorder %s24, 1
      %p96 = por %p94, %p95
      %p98 = scmp.ne.s32.totalorder %s83, %s97
      %p99 = scmp.eq.s32.totalorder %s24, 0
      %p100 = por %p98, %p99
      %s102 = sadd.s32 %s101, 1
      %p105 = scmp.eq.s32.totalorder %s18, 1
      %p106 = scmp.ne.s32.totalorder %s101, %s103
      %p107 = scmp.eq.s32.totalorder %s18, 0
      %p108 = por %p106, %p107
      %p109 = scmp.ne.s32.totalorder %s101, %s103
      %p110 = scmp.eq.s32.totalorder %s23, 1
      %p111 = por %p109, %p110
      %p112 = scmp.ne.s32.totalorder %s103, %s104
      %p113 = scmp.eq.s32.totalorder %s23, 0
      %p114 = por %p112, %p113
      %p115 = scmp.ne.s32.totalorder %s103, %s104
      %p116 = scmp.eq.s32.totalorder %s24, 1
      %p117 = por %p115, %p116
      %p119 = scmp.ne.s32.totalorder %s104, %s118
      %p120 = scmp.eq.s32.totalorder %s24, 0
      %p121 = por %p119, %p120
      %s123 = sadd.s32 %s122, 1
      %p126 = scmp.eq.s32.totalorder %s18, 1
      %p127 = scmp.ne.s32.totalorder %s122, %s124
      %p128 = scmp.eq.s32.totalorder %s18, 0
      %p129 = por %p127, %p128
      %p130 = scmp.ne.s32.totalorder %s122, %s124
      %p131 = scmp.eq.s32.totalorder %s23, 1
      %p132 = por %p130, %p131
      %p133 = scmp.ne.s32.totalorder %s124, %s125
      %p134 = scmp.eq.s32.totalorder %s23, 0
      %p135 = por %p133, %p134
      %p136 = scmp.ne.s32.totalorder %s124, %s125
      %p137 = scmp.eq.s32.totalorder %s24, 1
      %p138 = por %p136, %p137
      %p140 = scmp.ne.s32.totalorder %s125, %s139
      %p141 = scmp.eq.s32.totalorder %s24, 0
      %p142 = por %p140, %p141
      %s144 = sadd.s32 %s143, 1
      %p147 = scmp.eq.s32.totalorder %s18, 1
      %p148 = scmp.ne.s32.totalorder %s143, %s145
      %p149 = scmp.eq.s32.totalorder %s18, 0
      %p150 = por %p148, %p149
      %p151 = scmp.ne.s32.totalorder %s143, %s145
      %p152 = scmp.eq.s32.totalorder %s23, 1
      %p153 = por %p151, %p152
      %p154 = scmp.ne.s32.totalorder %s145, %s146
      %p155 = scmp.eq.s32.totalorder %s23, 0
      %p156 = por %p154, %p155
      %p157 = scmp.ne.s32.totalorder %s145, %s146
      %p158 = scmp.eq.s32.totalorder %s24, 1
      %p159 = por %p157, %p158
      %p161 = scmp.ne.s32.totalorder %s146, %s160
      %p162 = scmp.eq.s32.totalorder %s24, 0
      %p163 = por %p161, %p162
      %s164 = ssub.s32 %s25, %s37
      %s165 = ssub.s32 %s26, %s33
      %s166 = sor.u32 %s164, %s165
      %p167 = scmp.eq.s32.totalorder %s166, 0
      %s169 = sadd.s32 %s168, 1
      %s170 = scalar_select %p167, %s168, %s169
      %p173 = pneg %p167
      %p174 = scmp.eq.s32.totalorder %s18, 1
      %p175 = por %p173, %p174
      %p176 = scmp.ne.s32.totalorder %s168, %s171
      %p177 = scmp.eq.s32.totalorder %s18, 0
      %p178 = por %p176, %p177
      %p179 = scmp.ne.s32.totalorder %s168, %s171
      %p180 = scmp.eq.s32.totalorder %s23, 1
      %p181 = por %p179, %p180
      %p182 = scmp.ne.s32.totalorder %s171, %s172
      %p183 = scmp.eq.s32.totalorder %s23, 0
      %p184 = por %p182, %p183
      %p185 = scmp.ne.s32.totalorder %s171, %s172
      %p186 = scmp.eq.s32.totalorder %s24, 1
      %p187 = por %p185, %p186
      %p189 = scmp.ne.s32.totalorder %s172, %s188
      %p190 = scmp.eq.s32.totalorder %s24, 0
      %p191 = por %p189, %p190
      %s192 = ssub.s32 %s25, %s37
      %s193 = ssub.s32 %s26, %s33
      %s194 = sor.u32 %s192, %s193
      %p195 = scmp.eq.s32.totalorder %s194, 0
      %s197 = sadd.s32 %s196, 1
      %s198 = scalar_select %p195, %s196, %s197
      %p201 = pneg %p195
      %p202 = scmp.eq.s32.totalorder %s18, 1
      %p203 = por %p201, %p202
      %p204 = scmp.ne.s32.totalorder %s196, %s199
      %p205 = scmp.eq.s32.totalorder %s18, 0
      %p206 = por %p204, %p205
      %p207 = scmp.ne.s32.totalorder %s196, %s199
      %p208 = scmp.eq.s32.totalorder %s23, 1
      %p209 = por %p207, %p208
      %p210 = scmp.ne.s32.totalorder %s199, %s200
      %p211 = scmp.eq.s32.totalorder %s23, 0
      %p212 = por %p210, %p211
      %p213 = scmp.ne.s32.totalorder %s199, %s200
      %p214 = scmp.eq.s32.totalorder %s24, 1
      %p215 = por %p213, %p214
      %p217 = scmp.ne.s32.totalorder %s200, %s216
      %p218 = scmp.eq.s32.totalorder %s24, 0
      %p219 = por %p217, %p218
      %p220 = scmp.le.s32.totalorder 1, %s18
      %p221 = scmp.lt.s32.totalorder %s18, 3
      %p222 = pnand %p220, %p221
      %p223 = pneg %p222
      // Predicated region
      $region9: #{tpu_custom_call.1} parent=5 // pred_check
        _
      $region10: #{tpu_custom_call.1} parent=5 // pred_check_branch
        %225 = sbr.rel (%p222) target = $region12
      $region11: #{tpu_custom_call.1} parent=5 // pred_region
        %s226 = ssub.s32 %s18, 1
        // Predicated region
        $region13: #{tpu_custom_call.1} parent=11 // pred_check
          %p227 = pneg %p51
        $region14: #{tpu_custom_call.1} parent=11 // pred_check_branch
          %229 = sbr.rel (%p227) target = $region16
        $region15: #{tpu_custom_call.1} parent=11 // pred_region
          _
        $region16: #{tpu_custom_call.1} parent=11 // pred_fallthru
          _
        // Predicated region
        $region17: #{tpu_custom_call.1} parent=11 // pred_check
          %p230 = pneg %p72
        $region18: #{tpu_custom_call.1} parent=11 // pred_check_branch
          %232 = sbr.rel (%p230) target = $region20
        $region19: #{tpu_custom_call.1} parent=11 // pred_region
          _
        $region20: #{tpu_custom_call.1} parent=11 // pred_fallthru
          _
        // Predicated region
        $region21: #{tpu_custom_call.1} parent=11 // pred_check
          %p233 = pneg %p93
        $region22: #{tpu_custom_call.1} parent=11 // pred_check_branch
          %235 = sbr.rel (%p233) target = $region24
        $region23: #{tpu_custom_call.1} parent=11 // pred_region
          %s237 = ssub.s32 1024, 1024
          %238 = vsyncadd [#allocation3], %s237
          %s239 = sshll.u32 [#allocation2], 4
          %s240 = int_to_ptr.vmem [resolvable:$true] %s239
          %245 = dma.hbm_to_vmem [thread:$0]  %s2, 1024, %s240, [#allocation3], 128, 128, 8
        $region24: #{tpu_custom_call.1} parent=11 // pred_fallthru
          _
        // Predicated region
        $region25: #{tpu_custom_call.1} parent=11 // pred_check
          %p246 = pneg %p114
        $region26: #{tpu_custom_call.1} parent=11 // pred_check_branch
          %248 = sbr.rel (%p246) target = $region28
        $region27: #{tpu_custom_call.1} parent=11 // pred_region
          _
        $region28: #{tpu_custom_call.1} parent=11 // pred_fallthru
          _
        // Predicated region
        $region29: #{tpu_custom_call.1} parent=11 // pred_check
          %p249 = pneg %p135
        $region30: #{tpu_custom_call.1} parent=11 // pred_check_branch
          %251 = sbr.rel (%p249) target = $region32
        $region31: #{tpu_custom_call.1} parent=11 // pred_region
          %s253 = ssub.s32 1024, 1024
          %254 = vsyncadd [#allocation6], %s253
          %s255 = sshll.u32 [#allocation5], 4
          %s256 = int_to_ptr.vmem [resolvable:$true] %s255
          %261 = dma.hbm_to_vmem [thread:$0]  %s4, 1024, %s256, [#allocation6], 128, 128, 8
        $region32: #{tpu_custom_call.1} parent=11 // pred_fallthru
          _
        // Predicated region
        $region33: #{tpu_custom_call.1} parent=11 // pred_check
          %p262 = pneg %p156
        $region34: #{tpu_custom_call.1} parent=11 // pred_check_branch
          %264 = sbr.rel (%p262) target = $region36
        $region35: #{tpu_custom_call.1} parent=11 // pred_region
          %s266 = ssub.s32 1024, 1024
          %267 = vsyncadd [#allocation6], %s266
          %s268 = sshll.u32 [#allocation7], 4
          %s269 = int_to_ptr.vmem [resolvable:$true] %s268
          %274 = dma.hbm_to_vmem [thread:$0]  %s5, 1024, %s269, [#allocation6], 128, 128, 8
        $region36: #{tpu_custom_call.1} parent=11 // pred_fallthru
          _
      $region12: #{tpu_custom_call.1} parent=5 // pred_fallthru
        _
      %p275 = scmp.lt.s32.totalorder %s18, 2
      // Predicated region
      $region37: #{tpu_custom_call.1} parent=5 // pred_check
        %p276 = pneg %p275
      $region38: #{tpu_custom_call.1} parent=5 // pred_check_branch
        %278 = sbr.rel (%p276) target = $region40
      $region39: #{tpu_custom_call.1} parent=5 // pred_region
        // Predicated region
        $region41: #{tpu_custom_call.1} parent=39 // pred_check
          %p279 = pneg %p178
        $region42: #{tpu_custom_call.1} parent=39 // pred_check_branch
          %281 = sbr.rel (%p279) target = $region44
        $region43: #{tpu_custom_call.1} parent=39 // pred_region
          %p282 = scmp.lt.s32.totalorder %s25, 1
          %s283 = scalar_select %p282, %s25, 1
          %p284 = scmp.lt.s32.totalorder %s26, 0
          %s285 = scalar_select %p284, %s26, 0
          %s286 = sadd.s32 %s285, %s283
          %s287 = smul.addr %s286, 4
          %s288 = scalar_lea.vmem %s6, %s287
        $region44: #{tpu_custom_call.1} parent=39 // pred_fallthru
          _
      $region40: #{tpu_custom_call.1} parent=5 // pred_fallthru
        _
      %p289 = scmp.le.s32.totalorder 1, %s18
      %p290 = scmp.lt.s32.totalorder %s18, 3
      %p291 = pnand %p289, %p290
      %p292 = pneg %p291
      // Predicated region
      $region45: #{tpu_custom_call.1} parent=5 // pred_check
        _
      $region46: #{tpu_custom_call.1} parent=5 // pred_check_branch
        %294 = sbr.rel (%p291) target = $region48
      $region47: #{tpu_custom_call.1} parent=5 // pred_region
        %s295 = ssub.s32 %s18, 1
        // Predicated region
        $region49: #{tpu_custom_call.1} parent=47 // pred_check
          %p296 = pneg %p93
        $region50: #{tpu_custom_call.1} parent=47 // pred_check_branch
          %298 = sbr.rel (%p296) target = $region52
        $region51: #{tpu_custom_call.1} parent=47 // pred_region
          %299 = dma.done [#allocation3], 1024
        $region52: #{tpu_custom_call.1} parent=47 // pred_fallthru
          _
        // Predicated region
        $region53: #{tpu_custom_call.1} parent=47 // pred_check
          %p300 = pneg %p135
        $region54: #{tpu_custom_call.1} parent=47 // pred_check_branch
          %302 = sbr.rel (%p300) target = $region56
        $region55: #{tpu_custom_call.1} parent=47 // pred_region
          %303 = dma.done [#allocation6], 1024
        $region56: #{tpu_custom_call.1} parent=47 // pred_fallthru
          _
        // Predicated region
        $region57: #{tpu_custom_call.1} parent=47 // pred_check
          %p304 = pneg %p156
        $region58: #{tpu_custom_call.1} parent=47 // pred_check_branch
          %306 = sbr.rel (%p304) target = $region60
        $region59: #{tpu_custom_call.1} parent=47 // pred_region
          %307 = dma.done [#allocation6], 1024
        $region60: #{tpu_custom_call.1} parent=47 // pred_fallthru
          _
        %p308 = pneg %p51
        %p309 = pneg %p48
        %p310 = pneg %p72
        %p311 = pneg %p69
        %p312 = pneg %p93
        %p313 = pneg %p90
        %p314 = pneg %p114
        %p315 = pneg %p111
        %p316 = pneg %p135
        %p317 = pneg %p132
        %p318 = pneg %p156
        %p319 = pneg %p153
        %p320 = scmp.lt.s32.totalorder %s27, 1
        %s321 = scalar_select %p320, %s27, 1
        %p322 = scmp.lt.s32.totalorder %s28, 0
        %s323 = scalar_select %p322, %s28, 0
        %s324 = sadd.s32 %s323, %s321
        %s325 = smul.addr %s324, 4
        %s326 = scalar_lea.vmem %s6, %s325
        %p327 = pneg %p184
        %p328 = pneg %p181
        %p329 = pneg %p212
        %p330 = pneg %p209
        %s331 = sand.u32 %s199, 1
        %s332 = scalar_lea.sflag [#allocation4], %s331
        %s333 = sand.u32 %s199, 1
        %s334 = smul.addr %s333, 4
        %s335 = scalar_lea.vmem [#allocation8], %s334
        %p336 = scmp.lt.s32.totalorder %s27, 1
        %s337 = scalar_select %p336, %s27, 1
        %p338 = scmp.lt.s32.totalorder %s28, 0
        %s339 = scalar_select %p338, %s28, 0
        %s340 = sadd.s32 %s339, %s337
        %s341 = smul.addr %s340, 4
        %s342 = scalar_lea.vmem %s6, %s341
        %v343 = vld [vmem:[%s342] sm:$0xf]
        %v344 = vld [vmem:[%s3] sm:$0xff]
        %v345 = vld [vmem:[%s3 + $0x8] sm:$0xff]
        %v346 = vld [vmem:[%s3 + $0x10] sm:$0xff]
        %v347 = vld [vmem:[%s3 + $0x18] sm:$0xff]
        %v348 = vld [vmem:[%s3 + $0x20] sm:$0xff]
        %v349 = vld [vmem:[%s3 + $0x28] sm:$0xff]
        %v350 = vld [vmem:[%s3 + $0x30] sm:$0xff]
        %v351 = vld [vmem:[%s3 + $0x38] sm:$0xff]
        %v352 = vld [vmem:[%s3 + $0x40] sm:$0xff]
        %v353 = vld [vmem:[%s3 + $0x48] sm:$0xff]
        %v354 = vld [vmem:[%s3 + $0x50] sm:$0xff]
        %v355 = vld [vmem:[%s3 + $0x58] sm:$0xff]
        %v356 = vld [vmem:[%s3 + $0x60] sm:$0xff]
        %v357 = vld [vmem:[%s3 + $0x68] sm:$0xff]
        %v358 = vld [vmem:[%s3 + $0x70] sm:$0xff]
        %v359 = vld [vmem:[%s3 + $0x78] sm:$0xff]
        %v360 = vld [vmem:[%s0] sm:$0xff]
        %v361 = vld [vmem:[%s0 + $0x8] sm:$0xff]
        %v362 = vld [vmem:[%s0 + $0x10] sm:$0xff]
        %v363 = vld [vmem:[%s0 + $0x18] sm:$0xff]
        %v364 = vld [vmem:[%s0 + $0x20] sm:$0xff]
        %v365 = vld [vmem:[%s0 + $0x28] sm:$0xff]
        %v366 = vld [vmem:[%s0 + $0x30] sm:$0xff]
        %v367 = vld [vmem:[%s0 + $0x38] sm:$0xff]
        %vm368 = vcmask 31744
        %v370 = vsel %vm368, %v360, 0
        %v373 = vsel %vm368, %v361, 0
        %v376 = vsel %vm368, %v362, 0
        %v379 = vsel %vm368, %v363, 0
        %v382 = vsel %vm368, %v364, 0
        %v385 = vsel %vm368, %v365, 0
        %v388 = vsel %vm368, %v366, 0
        %v391 = vsel %vm368, %v367, 0
        %vm393 = vcmask 1043456
        %v395 = vsel %vm393, %v343, 0
        %397 = vmatprep.subr.mxu0 0.0
        %398 = vmatpush1.msra.mxu0 %v395
        %399 = vmatprep.subr.mxu0 0.0
        %400 = vmatpush1.msra.mxu0 0.0
        %401 = vmatprep.subr.mxu0 0.0
        %402 = vmatpush1.msra.mxu0 0.0
        %403 = vmatprep.subr.mxu0 0.0
        %404 = vmatpush1.msra.mxu0 0.0
        %405 = vmatprep.subr.mxu0 0.0
        %406 = vmatpush1.msra.mxu0 0.0
        %407 = vmatprep.subr.mxu0 0.0
        %408 = vmatpush1.msra.mxu0 0.0
        %409 = vmatprep.subr.mxu0 0.0
        %410 = vmatpush1.msra.mxu0 0.0
        %411 = vmatprep.subr.mxu0 0.0
        %412 = vmatpush1.msra.mxu0 0.0
        %413 = vmatprep.subr.mxu0 0.0
        %414 = vmatpush1.msra.mxu0 0.0
        %415 = vmatprep.subr.mxu0 0.0
        %416 = vmatpush1.msra.mxu0 0.0
        %417 = vmatprep.subr.mxu0 0.0
        %418 = vmatpush1.msra.mxu0 0.0
        %419 = vmatprep.subr.mxu0 0.0
        %420 = vmatpush1.msra.mxu0 0.0
        %421 = vmatprep.subr.mxu0 0.0
        %422 = vmatpush1.msra.mxu0 0.0
        %423 = vmatprep.subr.mxu0 0.0
        %424 = vmatpush1.msra.mxu0 0.0
        %425 = vmatprep.subr.mxu0 0.0
        %426 = vmatpush1.msra.mxu0 0.0
        %427 = vmatprep.subr.mxu0 0.0
        %428 = vmatpush1.msra.mxu0 0.0
        %429 = vmatprep.subr.mxu0 0.0
        %430 = vmatpush1.msra.mxu0 0.0
        %431 = vmatprep.subr.mxu0 0.0
        %432 = vmatpush1.msra.mxu0 0.0
        %433 = vmatprep.subr.mxu0 0.0
        %434 = vmatpush1.msra.mxu0 0.0
        %435 = vmatprep.subr.mxu0 0.0
        %436 = vmatpush1.msra.mxu0 0.0
        %437 = vmatprep.subr.mxu0 0.0
        %438 = vmatpush1.msra.mxu0 0.0
        %439 = vmatprep.subr.mxu0 0.0
        %440 = vmatpush1.msra.mxu0 0.0
        %441 = vmatprep.subr.mxu0 0.0
        %442 = vmatpush1.msra.mxu0 0.0
        %443 = vmatprep.subr.mxu0 0.0
        %444 = vmatpush1.msra.mxu0 0.0
        %445 = vmatprep.subr.mxu0 0.0
        %446 = vmatpush1.msra.mxu0 0.0
        %447 = vmatprep.subr.mxu0 0.0
        %448 = vmatpush1.msra.mxu0 0.0
        %449 = vmatprep.subr.mxu0 0.0
        %450 = vmatpush1.msra.mxu0 0.0
        %451 = vmatprep.subr.mxu0 0.0
        %452 = vmatpush1.msra.mxu0 0.0
        %453 = vmatprep.subr.mxu0 0.0
        %454 = vmatpush1.msra.mxu0 0.0
        %455 = vmatprep.subr.mxu0 0.0
        %456 = vmatpush1.msra.mxu0 0.0
        %457 = vmatprep.subr.mxu0 0.0
        %458 = vmatpush1.msra.mxu0 0.0
        %459 = vmatprep.subr.mxu0 0.0
        %460 = vmatpush1.msra.mxu0 0.0
        %461 = vmatprep.mubr.f32.mxu0 0.0
        %462 = vmatmul.mubr.f32.gmra.mrb[0].mxu0 %v370
        %v463 = vpop.f32.mrb[0].mxu0
        %v464 = vadd.f32 0.0, %v463
        %v465 = vpop.f32.mrb[0].mxu0
        %466 = vmatprep.mubr.f32.mxu0 0.0
        %467 = vmatmul.mubr.f32.gmra.mrb[0].mxu0 %v373
        %v468 = vpop.f32.mrb[0].mxu0
        %v469 = vadd.f32 0.0, %v468
        %v470 = vpop.f32.mrb[0].mxu0
        %471 = vmatprep.mubr.f32.mxu0 0.0
        %472 = vmatmul.mubr.f32.gmra.mrb[0].mxu0 %v376
        %v473 = vpop.f32.mrb[0].mxu0
        %v474 = vadd.f32 0.0, %v473
        %v475 = vpop.f32.mrb[0].mxu0
        %476 = vmatprep.mubr.f32.mxu0 0.0
        %477 = vmatmul.mubr.f32.gmra.mrb[0].mxu0 %v379
        %v478 = vpop.f32.mrb[0].mxu0
        %v479 = vadd.f32 0.0, %v478
        %v480 = vpop.f32.mrb[0].mxu0
        %481 = vmatprep.mubr.f32.mxu0 0.0
        %482 = vmatmul.mubr.f32.gmra.mrb[0].mxu0 %v382
        %v483 = vpop.f32.mrb[0].mxu0
        %v484 = vadd.f32 0.0, %v483
        %v485 = vpop.f32.mrb[0].mxu0
        %486 = vmatprep.mubr.f32.mxu0 0.0
        %487 = vmatmul.mubr.f32.gmra.mrb[0].mxu0 %v385
        %v488 = vpop.f32.mrb[0].mxu0
        %v489 = vadd.f32 0.0, %v488
        %v490 = vpop.f32.mrb[0].mxu0
        %491 = vmatprep.mubr.f32.mxu0 0.0
        %492 = vmatmul.mubr.f32.gmra.mrb[0].mxu0 %v388
        %v493 = vpop.f32.mrb[0].mxu0
        %v494 = vadd.f32 0.0, %v493
        %v495 = vpop.f32.mrb[0].mxu0
        %496 = vmatprep.mubr.f32.mxu0 0.0
        %497 = vmatmul.mubr.f32.gmra.mrb[0].mxu0 %v391
        %v498 = vpop.f32.mrb[0].mxu0
        %v499 = vadd.f32 0.0, %v498
        %v500 = vpop.f32.mrb[0].mxu0
        %501 = vdwg.mxu0
        %v502 = vld [vmem:[%s1] sm:$0xff]
        %v503 = vld [vmem:[%s1 + $0x8] sm:$0xff]
        %v504 = vld [vmem:[%s1 + $0x10] sm:$0xff]
        %v505 = vld [vmem:[%s1 + $0x18] sm:$0xff]
        %v506 = vld [vmem:[%s1 + $0x20] sm:$0xff]
        %v507 = vld [vmem:[%s1 + $0x28] sm:$0xff]
        %v508 = vld [vmem:[%s1 + $0x30] sm:$0xff]
        %v509 = vld [vmem:[%s1 + $0x38] sm:$0xff]
        %v511 = vsel %vm368, %v502, 0
        %v514 = vsel %vm368, %v503, 0
        %v517 = vsel %vm368, %v504, 0
        %v520 = vsel %vm368, %v505, 0
        %v523 = vsel %vm368, %v506, 0
        %v526 = vsel %vm368, %v507, 0
        %v529 = vsel %vm368, %v508, 0
        %v532 = vsel %vm368, %v509, 0
        %534 = vmatprep.subr.mxu0 0.0
        %535 = vmatpush1.msra.mxu0 %v395
        %536 = vmatprep.subr.mxu0 0.0
        %537 = vmatpush1.msra.mxu0 0.0
        %538 = vmatprep.subr.mxu0 0.0
        %539 = vmatpush1.msra.mxu0 0.0
        %540 = vmatprep.subr.mxu0 0.0
        %541 = vmatpush1.msra.mxu0 0.0
        %542 = vmatprep.subr.mxu0 0.0
        %543 = vmatpush1.msra.mxu0 0.0
        %544 = vmatprep.subr.mxu0 0.0
        %545 = vmatpush1.msra.mxu0 0.0
        %546 = vmatprep.subr.mxu0 0.0
        %547 = vmatpush1.msra.mxu0 0.0
        %548 = vmatprep.subr.mxu0 0.0
        %549 = vmatpush1.msra.mxu0 0.0
        %550 = vmatprep.subr.mxu0 0.0
        %551 = vmatpush1.msra.mxu0 0.0
        %552 = vmatprep.subr.mxu0 0.0
        %553 = vmatpush1.msra.mxu0 0.0
        %554 = vmatprep.subr.mxu0 0.0
        %555 = vmatpush1.msra.mxu0 0.0
        %556 = vmatprep.subr.mxu0 0.0
        %557 = vmatpush1.msra.mxu0 0.0
        %558 = vmatprep.subr.mxu0 0.0
        %559 = vmatpush1.msra.mxu0 0.0
        %560 = vmatprep.subr.mxu0 0.0
        %561 = vmatpush1.msra.mxu0 0.0
        %562 = vmatprep.subr.mxu0 0.0
        %563 = vmatpush1.msra.mxu0 0.0
        %564 = vmatprep.subr.mxu0 0.0
        %565 = vmatpush1.msra.mxu0 0.0
        %566 = vmatprep.subr.mxu0 0.0
        %567 = vmatpush1.msra.mxu0 0.0
        %568 = vmatprep.subr.mxu0 0.0
        %569 = vmatpush1.msra.mxu0 0.0
        %570 = vmatprep.subr.mxu0 0.0
        %571 = vmatpush1.msra.mxu0 0.0
        %572 = vmatprep.subr.mxu0 0.0
        %573 = vmatpush1.msra.mxu0 0.0
        %574 = vmatprep.subr.mxu0 0.0
        %575 = vmatpush1.msra.mxu0 0.0
        %576 = vmatprep.subr.mxu0 0.0
        %577 = vmatpush1.msra.mxu0 0.0
        %578 = vmatprep.subr.mxu0 0.0
        %579 = vmatpush1.msra.mxu0 0.0
        %580 = vmatprep.subr.mxu0 0.0
        %581 = vmatpush1.msra.mxu0 0.0
        %582 = vmatprep.subr.mxu0 0.0
        %583 = vmatpush1.msra.mxu0 0.0
        %584 = vmatprep.subr.mxu0 0.0
        %585 = vmatpush1.msra.mxu0 0.0
        %586 = vmatprep.subr.mxu0 0.0
        %587 = vmatpush1.msra.mxu0 0.0
        %588 = vmatprep.subr.mxu0 0.0
        %589 = vmatpush1.msra.mxu0 0.0
        %590 = vmatprep.subr.mxu0 0.0
        %591 = vmatpush1.msra.mxu0 0.0
        %592 = vmatprep.subr.mxu0 0.0
        %593 = vmatpush1.msra.mxu0 0.0
        %594 = vmatprep.subr.mxu0 0.0
        %595 = vmatpush1.msra.mxu0 0.0
        %596 = vmatprep.subr.mxu0 0.0
        %597 = vmatpush1.msra.mxu0 0.0
        %598 = vmatprep.mubr.f32.mxu0 0.0
        %599 = vmatmul.mubr.f32.gmra.mrb[0].mxu0 %v511
        %v600 = vpop.f32.mrb[0].mxu0
        %v601 = vadd.f32 0.0, %v600
        %v602 = vpop.f32.mrb[0].mxu0
        %603 = vmatprep.mubr.f32.mxu0 0.0
        %604 = vmatmul.mubr.f32.gmra.mrb[0].mxu0 %v514
        %v605 = vpop.f32.mrb[0].mxu0
        %v606 = vadd.f32 0.0, %v605
        %v607 = vpop.f32.mrb[0].mxu0
        %608 = vmatprep.mubr.f32.mxu0 0.0
        %609 = vmatmul.mubr.f32.gmra.mrb[0].mxu0 %v517
        %v610 = vpop.f32.mrb[0].mxu0
        %v611 = vadd.f32 0.0, %v610
        %v612 = vpop.f32.mrb[0].mxu0
        %613 = vmatprep.mubr.f32.mxu0 0.0
        %614 = vmatmul.mubr.f32.gmra.mrb[0].mxu0 %v520
        %v615 = vpop.f32.mrb[0].mxu0
        %v616 = vadd.f32 0.0, %v615
        %v617 = vpop.f32.mrb[0].mxu0
        %618 = vmatprep.mubr.f32.mxu0 0.0
        %619 = vmatmul.mubr.f32.gmra.mrb[0].mxu0 %v523
        %v620 = vpop.f32.mrb[0].mxu0
        %v621 = vadd.f32 0.0, %v620
        %v622 = vpop.f32.mrb[0].mxu0
        %623 = vmatprep.mubr.f32.mxu0 0.0
        %624 = vmatmul.mubr.f32.gmra.mrb[0].mxu0 %v526
        %v625 = vpop.f32.mrb[0].mxu0
        %v626 = vadd.f32 0.0, %v625
        %v627 = vpop.f32.mrb[0].mxu0
        %628 = vmatprep.mubr.f32.mxu0 0.0
        %629 = vmatmul.mubr.f32.gmra.mrb[0].mxu0 %v529
        %v630 = vpop.f32.mrb[0].mxu0
        %v631 = vadd.f32 0.0, %v630
        %v632 = vpop.f32.mrb[0].mxu0
        %633 = vmatprep.mubr.f32.mxu0 0.0
        %634 = vmatmul.mubr.f32.gmra.mrb[0].mxu0 %v532
        %v635 = vpop.f32.mrb[0].mxu0
        %v636 = vadd.f32 0.0, %v635
        %v637 = vpop.f32.mrb[0].mxu0
        %638 = vdwg.mxu0
        %v639 = vld [vmem:[#allocation2] sm:$0xff]
        %v640 = vld [vmem:[#allocation2 + $0x8] sm:$0xff]
        %v641 = vld [vmem:[#allocation2 + $0x10] sm:$0xff]
        %v642 = vld [vmem:[#allocation2 + $0x18] sm:$0xff]
        %v643 = vld [vmem:[#allocation2 + $0x20] sm:$0xff]
        %v644 = vld [vmem:[#allocation2 + $0x28] sm:$0xff]
        %v645 = vld [vmem:[#allocation2 + $0x30] sm:$0xff]
        %v646 = vld [vmem:[#allocation2 + $0x38] sm:$0xff]
        %v647 = vmul.f32 %v464, %v639
        %v648 = vmul.f32 %v469, %v640
        %v649 = vmul.f32 %v474, %v641
        %v650 = vmul.f32 %v479, %v642
        %v651 = vmul.f32 %v484, %v643
        %v652 = vmul.f32 %v489, %v644
        %v653 = vmul.f32 %v494, %v645
        %v654 = vmul.f32 %v499, %v646
        %655 = vmatprep.subr.mxu0 0.0
        %656 = vmatpush1.msra.mxu0 %v344
        %657 = vmatprep.subr.mxu0 0.0
        %658 = vmatpush1.msra.mxu0 %v345
        %659 = vmatprep.subr.mxu0 0.0
        %660 = vmatpush1.msra.mxu0 %v346
        %661 = vmatprep.subr.mxu0 0.0
        %662 = vmatpush1.msra.mxu0 %v347
        %663 = vmatprep.subr.mxu0 0.0
        %664 = vmatpush1.msra.mxu0 %v348
        %665 = vmatprep.subr.mxu0 0.0
        %666 = vmatpush1.msra.mxu0 %v349
        %667 = vmatprep.subr.mxu0 0.0
        %668 = vmatpush1.msra.mxu0 %v350
        %669 = vmatprep.subr.mxu0 0.0
        %670 = vmatpush1.msra.mxu0 %v351
        %671 = vmatprep.subr.mxu0 0.0
        %672 = vmatpush1.msra.mxu0 %v352
        %673 = vmatprep.subr.mxu0 0.0
        %674 = vmatpush1.msra.mxu0 %v353
        %675 = vmatprep.subr.mxu0 0.0
        %676 = vmatpush1.msra.mxu0 %v354
        %677 = vmatprep.subr.mxu0 0.0
        %678 = vmatpush1.msra.mxu0 %v355
        %679 = vmatprep.subr.mxu0 0.0
        %680 = vmatpush1.msra.mxu0 %v356
        %681 = vmatprep.subr.mxu0 0.0
        %682 = vmatpush1.msra.mxu0 %v357
        %683 = vmatprep.subr.mxu0 0.0
        %684 = vmatpush1.msra.mxu0 %v358
        %685 = vmatprep.subr.mxu0 0.0
        %686 = vmatpush1.msra.mxu0 %v359
        %687 = vmatprep.subr.mxu0 0.0
        %688 = vmatpush1.msra.mxu0 0.0
        %689 = vmatprep.subr.mxu0 0.0
        %690 = vmatpush1.msra.mxu0 0.0
        %691 = vmatprep.subr.mxu0 0.0
        %692 = vmatpush1.msra.mxu0 0.0
        %693 = vmatprep.subr.mxu0 0.0
        %694 = vmatpush1.msra.mxu0 0.0
        %695 = vmatprep.subr.mxu0 0.0
        %696 = vmatpush1.msra.mxu0 0.0
        %697 = vmatprep.subr.mxu0 0.0
        %698 = vmatpush1.msra.mxu0 0.0
        %699 = vmatprep.subr.mxu0 0.0
        %700 = vmatpush1.msra.mxu0 0.0
        %701 = vmatprep.subr.mxu0 0.0
        %702 = vmatpush1.msra.mxu0 0.0
        %703 = vmatprep.subr.mxu0 0.0
        %704 = vmatpush1.msra.mxu0 0.0
        %705 = vmatprep.subr.mxu0 0.0
        %706 = vmatpush1.msra.mxu0 0.0
        %707 = vmatprep.subr.mxu0 0.0
        %708 = vmatpush1.msra.mxu0 0.0
        %709 = vmatprep.subr.mxu0 0.0
        %710 = vmatpush1.msra.mxu0 0.0
        %711 = vmatprep.subr.mxu0 0.0
        %712 = vmatpush1.msra.mxu0 0.0
        %713 = vmatprep.subr.mxu0 0.0
        %714 = vmatpush1.msra.mxu0 0.0
        %715 = vmatprep.subr.mxu0 0.0
        %716 = vmatpush1.msra.mxu0 0.0
        %717 = vmatprep.subr.mxu0 0.0
        %718 = vmatpush1.msra.mxu0 0.0
        %719 = vmatprep.mubr.f32.mxu0 0.0
        %720 = vmatmul.mubr.f32.gmra.mrb[0].mxu0 %v647
        %v721 = vpop.f32.mrb[0].mxu0
        %v722 = vadd.f32 %v601, %v721
        %v723 = vpop.f32.mrb[0].mxu0
        %724 = vmatprep.mubr.f32.mxu0 0.0
        %725 = vmatmul.mubr.f32.gmra.mrb[0].mxu0 %v648
        %v726 = vpop.f32.mrb[0].mxu0
        %v727 = vadd.f32 %v606, %v726
        %v728 = vpop.f32.mrb[0].mxu0
        %729 = vmatprep.mubr.f32.mxu0 0.0
        %730 = vmatmul.mubr.f32.gmra.mrb[0].mxu0 %v649
        %v731 = vpop.f32.mrb[0].mxu0
        %v732 = vadd.f32 %v611, %v731
        %v733 = vpop.f32.mrb[0].mxu0
        %734 = vmatprep.mubr.f32.mxu0 0.0
        %735 = vmatmul.mubr.f32.gmra.mrb[0].mxu0 %v650
        %v736 = vpop.f32.mrb[0].mxu0
        %v737 = vadd.f32 %v616, %v736
        %v738 = vpop.f32.mrb[0].mxu0
        %739 = vmatprep.mubr.f32.mxu0 0.0
        %740 = vmatmul.mubr.f32.gmra.mrb[0].mxu0 %v651
        %v741 = vpop.f32.mrb[0].mxu0
        %v742 = vadd.f32 %v621, %v741
        %v743 = vpop.f32.mrb[0].mxu0
        %744 = vmatprep.mubr.f32.mxu0 0.0
        %745 = vmatmul.mubr.f32.gmra.mrb[0].mxu0 %v652
        %v746 = vpop.f32.mrb[0].mxu0
        %v747 = vadd.f32 %v626, %v746
        %v748 = vpop.f32.mrb[0].mxu0
        %749 = vmatprep.mubr.f32.mxu0 0.0
        %750 = vmatmul.mubr.f32.gmra.mrb[0].mxu0 %v653
        %v751 = vpop.f32.mrb[0].mxu0
        %v752 = vadd.f32 %v631, %v751
        %v753 = vpop.f32.mrb[0].mxu0
        %754 = vmatprep.mubr.f32.mxu0 0.0
        %755 = vmatmul.mubr.f32.gmra.mrb[0].mxu0 %v654
        %v756 = vpop.f32.mrb[0].mxu0
        %v757 = vadd.f32 %v636, %v756
        %v758 = vpop.f32.mrb[0].mxu0
        %759 = vdwg.mxu0
        %v760 = vmul.f32 %v722, 0.2
        %v761 = vmul.f32 %v727, 0.2
        %v762 = vmul.f32 %v732, 0.2
        %v763 = vmul.f32 %v737, 0.2
        %v764 = vmul.f32 %v742, 0.2
        %v765 = vmul.f32 %v747, 0.2
        %v766 = vmul.f32 %v752, 0.2
        %v767 = vmul.f32 %v757, 0.2
        %v768 = vmax.f32 %v722, %v760
        %v769 = vmax.f32 %v727, %v761
        %v770 = vmax.f32 %v732, %v762
        %v771 = vmax.f32 %v737, %v763
        %v772 = vmax.f32 %v742, %v764
        %v773 = vmax.f32 %v747, %v765
        %v774 = vmax.f32 %v752, %v766
        %v775 = vmax.f32 %v757, %v767
        %v776 = vld [vmem:[#allocation5] sm:$0xff]
        %v777 = vld [vmem:[#allocation5 + $0x8] sm:$0xff]
        %v778 = vld [vmem:[#allocation5 + $0x10] sm:$0xff]
        %v779 = vld [vmem:[#allocation5 + $0x18] sm:$0xff]
        %v780 = vld [vmem:[#allocation5 + $0x20] sm:$0xff]
        %v781 = vld [vmem:[#allocation5 + $0x28] sm:$0xff]
        %v782 = vld [vmem:[#allocation5 + $0x30] sm:$0xff]
        %v783 = vld [vmem:[#allocation5 + $0x38] sm:$0xff]
        %v784 = vmul.f32 %v768, %v776
        %v785 = vmul.f32 %v769, %v777
        %v786 = vmul.f32 %v770, %v778
        %v787 = vmul.f32 %v771, %v779
        %v788 = vmul.f32 %v772, %v780
        %v789 = vmul.f32 %v773, %v781
        %v790 = vmul.f32 %v774, %v782
        %v791 = vmul.f32 %v775, %v783
        %v792 = vld [vmem:[#allocation7] sm:$0xff]
        %v793 = vld [vmem:[#allocation7 + $0x8] sm:$0xff]
        %v794 = vld [vmem:[#allocation7 + $0x10] sm:$0xff]
        %v795 = vld [vmem:[#allocation7 + $0x18] sm:$0xff]
        %v796 = vld [vmem:[#allocation7 + $0x20] sm:$0xff]
        %v797 = vld [vmem:[#allocation7 + $0x28] sm:$0xff]
        %v798 = vld [vmem:[#allocation7 + $0x30] sm:$0xff]
        %v799 = vld [vmem:[#allocation7 + $0x38] sm:$0xff]
        %v800 = vadd.f32 %v784, %v792
        %v801 = vadd.f32 %v785, %v793
        %v802 = vadd.f32 %v786, %v794
        %v803 = vadd.f32 %v787, %v795
        %v804 = vadd.f32 %v788, %v796
        %v805 = vadd.f32 %v789, %v797
        %v806 = vadd.f32 %v790, %v798
        %v807 = vadd.f32 %v791, %v799
        %v808 = vmax.f32 %v800, %v801
        %v809 = vrot.slane %v808, 4
        %v810 = vmax.f32 %v808, %v809
        %v811 = vrot.slane %v810, 2
        %v812 = vmax.f32 %v810, %v811
        %v813 = vrot.slane %v812, 1
        %v814 = vmax.f32 %v812, %v813
        %v815 = vsub.f32 %v800, %v814
        %v816 = vsub.f32 %v801, %v814
        %v817 = vmul.f32 %v815, 1.442695
        %v818 = vpow.pop %v817
        %v819 = vmul.f32 %v816, 1.442695
        %v820 = vpow.pop %v819
        %v821 = vadd.f32 %v818, %v820
        %v822 = vrot.slane %v821, 4
        %v823 = vadd.f32 %v821, %v822
        %v824 = vrot.slane %v823, 2
        %v825 = vadd.f32 %v823, %v824
        %v826 = vrot.slane %v825, 1
        %v827 = vadd.f32 %v825, %v826
        %v828 = vrcp.pop %v827
        %v829 = vmul.f32 0.25, %v828
        %v830 = vmul.f32 %v818, %v829
        %v831 = vmul.f32 %v820, %v829
        %v832 = vadd.f32 %v830, 0.0
        %v833 = vadd.f32 %v831, 0.0
        %v834 = vmax.f32 %v802, %v803
        %v835 = vrot.slane %v834, 4
        %v836 = vmax.f32 %v834, %v835
        %v837 = vrot.slane %v836, 2
        %v838 = vmax.f32 %v836, %v837
        %v839 = vrot.slane %v838, 1
        %v840 = vmax.f32 %v838, %v839
        %v841 = vsub.f32 %v802, %v840
        %v842 = vsub.f32 %v803, %v840
        %v843 = vmul.f32 %v841, 1.442695
        %v844 = vpow.pop %v843
        %v845 = vmul.f32 %v842, 1.442695
        %v846 = vpow.pop %v845
        %v847 = vadd.f32 %v844, %v846
        %v848 = vrot.slane %v847, 4
        %v849 = vadd.f32 %v847, %v848
        %v850 = vrot.slane %v849, 2
        %v851 = vadd.f32 %v849, %v850
        %v852 = vrot.slane %v851, 1
        %v853 = vadd.f32 %v851, %v852
        %v854 = vrcp.pop %v853
        %v855 = vmul.f32 0.25, %v854
        %v856 = vmul.f32 %v844, %v855
        %v857 = vmul.f32 %v846, %v855
        %v858 = vadd.f32 %v832, %v856
        %v859 = vadd.f32 %v833, %v857
        %v860 = vmax.f32 %v804, %v805
        %v861 = vrot.slane %v860, 4
        %v862 = vmax.f32 %v860, %v861
        %v863 = vrot.slane %v862, 2
        %v864 = vmax.f32 %v862, %v863
        %v865 = vrot.slane %v864, 1
        %v866 = vmax.f32 %v864, %v865
        %v867 = vsub.f32 %v804, %v866
        %v868 = vsub.f32 %v805, %v866
        %v869 = vmul.f32 %v867, 1.442695
        %v870 = vpow.pop %v869
        %v871 = vmul.f32 %v868, 1.442695
        %v872 = vpow.pop %v871
        %v873 = vadd.f32 %v870, %v872
        %v874 = vrot.slane %v873, 4
        %v875 = vadd.f32 %v873, %v874
        %v876 = vrot.slane %v875, 2
        %v877 = vadd.f32 %v875, %v876
        %v878 = vrot.slane %v877, 1
        %v879 = vadd.f32 %v877, %v878
        %v880 = vrcp.pop %v879
        %v881 = vmul.f32 0.25, %v880
        %v882 = vmul.f32 %v870, %v881
        %v883 = vmul.f32 %v872, %v881
        %v884 = vadd.f32 %v858, %v882
        %v885 = vadd.f32 %v859, %v883
        %v886 = vmax.f32 %v806, %v807
        %v887 = vrot.slane %v886, 4
        %v888 = vmax.f32 %v886, %v887
        %v889 = vrot.slane %v888, 2
        %v890 = vmax.f32 %v888, %v889
        %v891 = vrot.slane %v890, 1
        %v892 = vmax.f32 %v890, %v891
        %v893 = vsub.f32 %v806, %v892
        %v894 = vsub.f32 %v807, %v892
        %v895 = vmul.f32 %v893, 1.442695
        %v896 = vpow.pop %v895
        %v897 = vmul.f32 %v894, 1.442695
        %v898 = vpow.pop %v897
        %v899 = vadd.f32 %v896, %v898
        %v900 = vrot.slane %v899, 4
        %v901 = vadd.f32 %v899, %v900
        %v902 = vrot.slane %v901, 2
        %v903 = vadd.f32 %v901, %v902
        %v904 = vrot.slane %v903, 1
        %v905 = vadd.f32 %v903, %v904
        %v906 = vrcp.pop %v905
        %v907 = vmul.f32 0.25, %v906
        %v908 = vmul.f32 %v896, %v907
        %v909 = vmul.f32 %v898, %v907
        %v910 = vadd.f32 %v884, %v908
        %v911 = vadd.f32 %v885, %v909
        %v912 = vmul.f32 %v910, %v344
        %v913 = vmul.f32 %v911, %v345
        %v914 = vmul.f32 %v910, %v346
        %v915 = vmul.f32 %v911, %v347
        %v916 = vmul.f32 %v910, %v348
        %v917 = vmul.f32 %v911, %v349
        %v918 = vmul.f32 %v910, %v350
        %v919 = vmul.f32 %v911, %v351
        %v920 = vmul.f32 %v910, %v352
        %v921 = vmul.f32 %v911, %v353
        %v922 = vmul.f32 %v910, %v354
        %v923 = vmul.f32 %v911, %v355
        %v924 = vmul.f32 %v910, %v356
        %v925 = vmul.f32 %v911, %v357
        %v926 = vmul.f32 %v910, %v358
        %v927 = vmul.f32 %v911, %v359
        %928 = vmatprep.subr.mxu0 0.0
        %929 = vmatpush1.msra.mxu0 %v912
        %930 = vmatprep.subr.mxu0 0.0
        %931 = vmatpush1.msra.mxu0 %v913
        %932 = vmatprep.subr.mxu0 0.0
        %933 = vmatpush1.msra.mxu0 %v914
        %934 = vmatprep.subr.mxu0 0.0
        %935 = vmatpush1.msra.mxu0 %v915
        %936 = vmatprep.subr.mxu0 0.0
        %937 = vmatpush1.msra.mxu0 %v916
        %938 = vmatprep.subr.mxu0 0.0
        %939 = vmatpush1.msra.mxu0 %v917
        %940 = vmatprep.subr.mxu0 0.0
        %941 = vmatpush1.msra.mxu0 %v918
        %942 = vmatprep.subr.mxu0 0.0
        %943 = vmatpush1.msra.mxu0 %v919
        %944 = vmatprep.subr.mxu0 0.0
        %945 = vmatpush1.msra.mxu0 %v920
        %946 = vmatprep.subr.mxu0 0.0
        %947 = vmatpush1.msra.mxu0 %v921
        %948 = vmatprep.subr.mxu0 0.0
        %949 = vmatpush1.msra.mxu0 %v922
        %950 = vmatprep.subr.mxu0 0.0
        %951 = vmatpush1.msra.mxu0 %v923
        %952 = vmatprep.subr.mxu0 0.0
        %953 = vmatpush1.msra.mxu0 %v924
        %954 = vmatprep.subr.mxu0 0.0
        %955 = vmatpush1.msra.mxu0 %v925
        %956 = vmatprep.subr.mxu0 0.0
        %957 = vmatpush1.msra.mxu0 %v926
        %958 = vmatprep.subr.mxu0 0.0
        %959 = vmatpush1.msra.mxu0 %v927
        %960 = vmatprep.subr.mxu0 0.0
        %961 = vmatpush1.msra.mxu0 0.0
        %962 = vmatprep.subr.mxu0 0.0
        %963 = vmatpush1.msra.mxu0 0.0
        %964 = vmatprep.subr.mxu0 0.0
        %965 = vmatpush1.msra.mxu0 0.0
        %966 = vmatprep.subr.mxu0 0.0
        %967 = vmatpush1.msra.mxu0 0.0
        %968 = vmatprep.subr.mxu0 0.0
        %969 = vmatpush1.msra.mxu0 0.0
        %970 = vmatprep.subr.mxu0 0.0
        %971 = vmatpush1.msra.mxu0 0.0
        %972 = vmatprep.subr.mxu0 0.0
        %973 = vmatpush1.msra.mxu0 0.0
        %974 = vmatprep.subr.mxu0 0.0
        %975 = vmatpush1.msra.mxu0 0.0
        %976 = vmatprep.subr.mxu0 0.0
        %977 = vmatpush1.msra.mxu0 0.0
        %978 = vmatprep.subr.mxu0 0.0
        %979 = vmatpush1.msra.mxu0 0.0
        %980 = vmatprep.subr.mxu0 0.0
        %981 = vmatpush1.msra.mxu0 0.0
        %982 = vmatprep.subr.mxu0 0.0
        %983 = vmatpush1.msra.mxu0 0.0
        %984 = vmatprep.subr.mxu0 0.0
        %985 = vmatpush1.msra.mxu0 0.0
        %986 = vmatprep.subr.mxu0 0.0
        %987 = vmatpush1.msra.mxu0 0.0
        %988 = vmatprep.subr.mxu0 0.0
        %989 = vmatpush1.msra.mxu0 0.0
        %990 = vmatprep.subr.mxu0 0.0
        %991 = vmatpush1.msra.mxu0 0.0
        %992 = vmatprep.mubr.f32.mxu0 0.0
        %993 = vmatmul.mubr.f32.gmra.mrb[0].mxu0 %v343
        %v994 = vpop.f32.mrb[0].mxu0
        %v995 = vadd.f32 0.0, %v994
        %v996 = vpop.f32.mrb[0].mxu0
        %997 = vdwg.mxu0
        %vm998 = vcmp.gt.f32.partialorder %v995, 0.0
        %v999 = vmin.f32 %v995, 0.0
        %v1000 = vmul.f32 %v999, 1.442695
        %v1001 = vpow.pop %v1000
        %v1002 = vsub.f32 %v1001, 1.0
        %v1003 = vsel %vm998, %v995, %v1002
        %1004 = vst [vmem:[%s335] sm:$0xf] %v1003
        %s1005 = sand.u32 %s199, 1
        %s1006 = scalar_lea.sflag [#allocation4], %s1005
        %s1007 = sand.u32 %s199, 1
        %s1008 = smul.addr %s1007, 4
        %s1009 = scalar_lea.vmem [#allocation8], %s1008
        // Predicated region
        $region61: #{tpu_custom_call.1} parent=47 // pred_check
          %p1010 = pneg %p209
        $region62: #{tpu_custom_call.1} parent=47 // pred_check_branch
          %1012 = sbr.rel (%p1010) target = $region64
        $region63: #{tpu_custom_call.1} parent=47 // pred_region
          %s1014 = ssub.s32 64, 64
          %1015 = vsyncadd %s1006, %s1014
          %s1016 = sadd.s32 %s28, %s27
          %s1017 = smul.addr %s1016, 64
          %s1018 = scalar_lea.hbm %s7, %s1017
          %s1020 = sshll.u32 %s1009, 4
          %s1021 = int_to_ptr.vmem [resolvable:$true] %s1020
          %1023 = dma.vmem_to_hbm [thread:$0]  %s1021, 64, %s1018, %s1006
        $region64: #{tpu_custom_call.1} parent=47 // pred_fallthru
          _
      $region48: #{tpu_custom_call.1} parent=5 // pred_fallthru
        _
      %p1024 = scmp.le.s32.totalorder 2, %s18
      // Predicated region
      $region65: #{tpu_custom_call.1} parent=5 // pred_check
        %p1025 = pneg %p1024
      $region66: #{tpu_custom_call.1} parent=5 // pred_check_branch
        %1027 = sbr.rel (%p1025) target = $region68
      $region67: #{tpu_custom_call.1} parent=5 // pred_region
        %s1028 = ssub.s32 %s18, 2
        // Predicated region
        $region69: #{tpu_custom_call.1} parent=67 // pred_check
          %p1029 = pneg %p215
        $region70: #{tpu_custom_call.1} parent=67 // pred_check_branch
          %1031 = sbr.rel (%p1029) target = $region72
        $region71: #{tpu_custom_call.1} parent=67 // pred_region
          %s1032 = sand.u32 %s200, 1
          %s1033 = scalar_lea.sflag [#allocation4], %s1032
          %s1034 = sand.u32 %s200, 1
          %s1035 = smul.addr %s1034, 4
          %s1036 = scalar_lea.vmem [#allocation8], %s1035
          %1037 = dma.done %s1033, 64
        $region72: #{tpu_custom_call.1} parent=67 // pred_fallthru
          _
      $region68: #{tpu_custom_call.1} parent=5 // pred_fallthru
        _
    $region6: #{tpu_custom_call.1} parent=1 // loop_footer
      %s22 = sadd.s32 1, %s18
    $region7: #{tpu_custom_call.1} parent=1 // loop_footer_branch
      %17 = sbr.rel target = $region3
    $region8: #{tpu_custom_call.1} parent=1 // loop_exit
      _
    %1038 = vsyncpa [#allocation3], 1
    %s1039 = scalar_lea.sflag [#allocation3], 1
    %1040 = vsyncpa %s1039, 1
    %1041 = vsyncpa [#allocation6], 1
    %1042 = vsyncpa [#allocation4], 1
    %s1043 = scalar_lea.sflag [#allocation4], 1
    %1044 = vsyncpa %s1043, 1

</llo_original>
